<compile_context>
chip_gen: v5e
topology: v5e:2x2
jax: 0.10.0
libtpu: 0.0.40
codegen_flags: <defaults>
</compile_context>

<pallas_src>
import jax
import jax.numpy as jnp
from jax.experimental import pallas as pl
from jax.experimental.pallas import tpu as pltpu

_COLS = 1024             # lane-dense last dim (large multiple of 128)
_MAX_BLOCK_ROWS = 512    # 512*1024*4B = 2 MiB per array per pipeline buffer
_MIN_GRID_STEPS = 4      # keep DMA/compute overlap + both v7x TCs busy
_PALLAS_MIN_N = 65536    # below this, XLA's fused elementwise loop wins


def _round_up(x, m):
    return ((x + m - 1) // m) * m


# ---------------------------------------------------------------------------
# Fused sincos: one shared Cody-Waite range reduction, two minimax polynomials
# (fdlibm k_sinf / k_cosf coefficients, |r| <= pi/4).  All VPU ops, f32.
# ---------------------------------------------------------------------------
_TWO_OVER_PI = 0.6366197723675814
_PIO2_HI = 1.5707962512969971e+00     # float32 with trailing zeros (0x3FC90FDA)
_PIO2_LO = 7.5497894158615964e-08     # pi/2 - _PIO2_HI

_S1 = -1.6666667163e-01
_S2 = 8.3333337680e-03
_S3 = -1.9841270114e-04
_S4 = 2.7557314297e-06

_C1 = 4.1666667908e-02
_C2 = -1.3888889225e-03
_C3 = 2.4801587642e-05


def _sincos_f32(x):
    """Return (sin(x), cos(x)) in f32 with a single shared range reduction."""
    k = jnp.floor(x * _TWO_OVER_PI + 0.5)          # nearest multiple of pi/2
    r = x - k * _PIO2_HI
    r = r - k * _PIO2_LO
    r2 = r * r
    # sin(r), cos(r) on |r| <= pi/4
    s_poly = r + r * r2 * (_S1 + r2 * (_S2 + r2 * (_S3 + r2 * _S4)))
    c_poly = 1.0 + r2 * (-0.5 + r2 * (_C1 + r2 * (_C2 + r2 * _C3)))
    # Quadrant fix-up: q = k mod 4 (int bitwise-and handles negatives too).
    q = k.astype(jnp.int32) & 3
    swap = (q == 1) | (q == 3)
    s_base = jnp.where(swap, c_poly, s_poly)
    c_base = jnp.where(swap, s_poly, c_poly)
    sin_x = jnp.where((q == 2) | (q == 3), -s_base, s_base)
    cos_x = jnp.where((q == 1) | (q == 2), -c_base, c_base)
    return sin_x, cos_x


def accel_law_kernel(g_ref, mu_ref, th_ref, out_ref):
    # g_ref: (1,1) scalar in SMEM; mu/th/out: (block_rows, _COLS) tiles in VMEM.
    g = g_ref[0, 0]
    th = th_ref[...].astype(jnp.float32)
    mu = mu_ref[...].astype(jnp.float32)
    sin_th, cos_th = _sincos_f32(th)
    out_ref[...] = (g * (sin_th - mu * cos_th)).astype(out_ref.dtype)


def _as_io_array(x):
    """Flatten; keep f32/bf16 I/O dtypes, promote everything else to f32."""
    x = jnp.ravel(jnp.asarray(x))
    if x.dtype not in (jnp.dtype(jnp.float32), jnp.dtype(jnp.bfloat16)):
        x = x.astype(jnp.float32)
    return x


def acceleration_law(g, mu, th, *, out_dtype=jnp.float32, force_pallas=False):
    """JAX equivalent of AccelerationLaw.forward.

    g  : scalar parameter (trainable in the PyTorch module)
    mu : any shape (flattened)
    th : any shape (flattened, same number of elements as mu)
    returns: (N, 1) array in `out_dtype` (default float32, like the module).
    """
    mu_f = _as_io_array(mu)
    th_f = _as_io_array(th)
    if mu_f.shape != th_f.shape:
        raise ValueError("mu and th must have the same number of elements")
    n = int(mu_f.shape[0])
    g_f = jnp.asarray(g, jnp.float32)

    # Small / medium N: a single fused XLA elementwise loop is already at the
    # HBM roofline; pallas_call launch + wrapper passes would only add cost.
    if n < _PALLAS_MIN_N and not force_pallas:
        mu32 = mu_f.astype(jnp.float32)
        th32 = th_f.astype(jnp.float32)
        a = g_f * (jnp.sin(th32) - mu32 * jnp.cos(th32))
        return a.astype(out_dtype).reshape(-1, 1)

    # Lane-dense (rows, 1024) view.  Pad only to an 8-row boundary
    # (< 9216 elements of padding, independent of N).
    rows = _round_up(pl.cdiv(n, _COLS), 8)
    padded = rows * _COLS
    if padded != n:
        mu_f = jnp.pad(mu_f, (0, padded - n))
        th_f = jnp.pad(th_f, (0, padded - n))
    mu2 = mu_f.reshape(rows, _COLS)
    th2 = th_f.reshape(rows, _COLS)
    g2 = g_f.reshape(1, 1)

    # Near-divisor block choice: >= _MIN_GRID_STEPS steps when possible
    # (pipelining + megacore), <= _MAX_BLOCK_ROWS rows (2 MiB/array/buffer),
    # sublane-aligned.  The last grid step may be a clipped partial block;
    # Pallas discards its out-of-range writes and the garbage reads only feed
    # lanes whose results are sliced off below.
    nblk = max(_MIN_GRID_STEPS, pl.cdiv(rows, _MAX_BLOCK_ROWS))
    block_rows = min(_MAX_BLOCK_ROWS, max(8, _round_up(pl.cdiv(rows, nblk), 8)))
    grid = (pl.cdiv(rows, block_rows),)

    in_bytes = padded * (mu2.dtype.itemsize + th2.dtype.itemsize)
    out_bytes = padded * jnp.dtype(out_dtype).itemsize

    out = pl.pallas_call(
        accel_law_kernel,
        out_shape=jax.ShapeDtypeStruct((rows, _COLS), out_dtype),
        grid=grid,
        in_specs=[
            pl.BlockSpec(memory_space=pltpu.MemorySpace.SMEM),     # scalar g
            pl.BlockSpec((block_rows, _COLS), lambda i: (i, 0)),   # mu tile
            pl.BlockSpec((block_rows, _COLS), lambda i: (i, 0)),   # th tile
        ],
        out_specs=pl.BlockSpec((block_rows, _COLS), lambda i: (i, 0)),
        compiler_params=pltpu.CompilerParams(
            # Megacore sharding on v7x (2 TCs); harmless no-op on v5e/v6e.
            dimension_semantics=("parallel",),
        ),
        cost_estimate=pl.CostEstimate(
            flops=40 * padded,        # fused sincos + combine, all VPU
            transcendentals=0,        # no EUP ops in this kernel
            bytes_accessed=in_bytes + out_bytes,
        ),
    )(g2, mu2, th2)

    flat = out.reshape(-1)
    if padded != n:
        flat = flat[:n]
    return flat.reshape(-1, 1)


if __name__ == "__main__":
    # Deterministic parameter init (matches nn.Parameter(torch.tensor(16.0))).
    g = jnp.float32(16.0)

    key = jax.random.PRNGKey(0)
    k_mu, k_th = jax.random.split(key)

    # --- Path 1: Pallas kernel (forced; small-ish N, ragged tail exercised) --
    n = 4096 + 37
    mu = jax.random.uniform(k_mu, (n,), jnp.float32, minval=0.0, maxval=0.5)
    th = jax.random.uniform(k_th, (n,), jnp.float32, minval=0.1, maxval=1.2)

    out = acceleration_law(g, mu, th, force_pallas=True)
    out = jax.block_until_ready(out)

    ref = g * (jnp.sin(th.reshape(-1, 1)) - mu.reshape(-1, 1) * jnp.cos(th.reshape(-1, 1)))
    assert out.shape == (n, 1)
    assert bool(jnp.allclose(out, ref, atol=5e-5, rtol=1e-5))

    # --- Path 2: small-N fallback (plain fused jnp, identical math) ----------
    mu_s, th_s = mu[:8], th[:8]
    out_s = jax.block_until_ready(acceleration_law(g, mu_s, th_s))
    ref_s = g * (jnp.sin(th_s.reshape(-1, 1)) - mu_s.reshape(-1, 1) * jnp.cos(th_s.reshape(-1, 1)))
    assert out_s.shape == (8, 1)
    assert bool(jnp.allclose(out_s, ref_s, atol=5e-5, rtol=1e-5))

    print("KERNEL_OK")
</pallas_src>

<mosaic_0001>
module attributes {stable_mosaic.version = 11 : i64} {
  func.func @accel_law_kernel(%arg0: i32, %arg1: memref<1x1xf32, #tpu.memory_space<smem>>, %arg2: memref<8x1024xf32, #tpu.memory_space<vmem>>, %arg3: memref<8x1024xf32, #tpu.memory_space<vmem>>, %arg4: memref<8x1024xf32, #tpu.memory_space<vmem>>) attributes {dimension_semantics = [#tpu.dimension_semantics<parallel>], iteration_bounds = array<i64: 1>, scalar_prefetch = 0 : i64, scratch_operands = 0 : i64, tpu.core_type = #tpu.core_type<tc>, window_params = [{transform_indices = @transform_0, window_bounds = array<i64: 1, 1>}, {transform_indices = @transform_1, window_bounds = array<i64: 8, 1024>}, {transform_indices = @transform_2, window_bounds = array<i64: 8, 1024>}, {transform_indices = @transform_3, window_bounds = array<i64: 8, 1024>}]} {
    %c0 = arith.constant 0 : index
    %c0_0 = arith.constant 0 : index
    %0 = memref.load %arg1[%c0, %c0_0] : memref<1x1xf32, #tpu.memory_space<smem>>
    %c0_1 = arith.constant 0 : index
    %c0_2 = arith.constant 0 : index
    %1 = vector.load %arg3[%c0_1, %c0_2] : memref<8x1024xf32, #tpu.memory_space<vmem>>, vector<8x1024xf32>
    %c0_3 = arith.constant 0 : index
    %c0_4 = arith.constant 0 : index
    %2 = vector.load %arg2[%c0_3, %c0_4] : memref<8x1024xf32, #tpu.memory_space<vmem>>, vector<8x1024xf32>
    %cst = arith.constant 0.636619746 : f32
    %3 = vector.broadcast %cst : f32 to vector<8x1024xf32>
    %4 = arith.mulf %1, %3 : vector<8x1024xf32>
    %cst_5 = arith.constant 5.000000e-01 : f32
    %5 = vector.broadcast %cst_5 : f32 to vector<8x1024xf32>
    %6 = arith.addf %4, %5 : vector<8x1024xf32>
    %7 = math.floor %6 : vector<8x1024xf32>
    %cst_6 = arith.constant 1.57079625 : f32
    %8 = vector.broadcast %cst_6 : f32 to vector<8x1024xf32>
    %9 = arith.mulf %7, %8 : vector<8x1024xf32>
    %10 = arith.subf %1, %9 : vector<8x1024xf32>
    %cst_7 = arith.constant 7.54978942E-8 : f32
    %11 = vector.broadcast %cst_7 : f32 to vector<8x1024xf32>
    %12 = arith.mulf %7, %11 : vector<8x1024xf32>
    %13 = arith.subf %10, %12 : vector<8x1024xf32>
    %14 = arith.mulf %13, %13 : vector<8x1024xf32>
    %15 = arith.mulf %13, %14 : vector<8x1024xf32>
    %cst_8 = arith.constant 2.75573143E-6 : f32
    %16 = vector.broadcast %cst_8 : f32 to vector<8x1024xf32>
    %17 = arith.mulf %14, %16 : vector<8x1024xf32>
    %cst_9 = arith.constant -1.98412701E-4 : f32
    %18 = vector.broadcast %cst_9 : f32 to vector<8x1024xf32>
    %19 = arith.addf %18, %17 : vector<8x1024xf32>
    %20 = arith.mulf %14, %19 : vector<8x1024xf32>
    %cst_10 = arith.constant 0.00833333377 : f32
    %21 = vector.broadcast %cst_10 : f32 to vector<8x1024xf32>
    %22 = arith.addf %21, %20 : vector<8x1024xf32>
    %23 = arith.mulf %14, %22 : vector<8x1024xf32>
    %cst_11 = arith.constant -0.166666672 : f32
    %24 = vector.broadcast %cst_11 : f32 to vector<8x1024xf32>
    %25 = arith.addf %24, %23 : vector<8x1024xf32>
    %26 = arith.mulf %15, %25 : vector<8x1024xf32>
    %27 = arith.addf %13, %26 : vector<8x1024xf32>
    %cst_12 = arith.constant 2.48015876E-5 : f32
    %28 = vector.broadcast %cst_12 : f32 to vector<8x1024xf32>
    %29 = arith.mulf %14, %28 : vector<8x1024xf32>
    %cst_13 = arith.constant -0.00138888892 : f32
    %30 = vector.broadcast %cst_13 : f32 to vector<8x1024xf32>
    %31 = arith.addf %30, %29 : vector<8x1024xf32>
    %32 = arith.mulf %14, %31 : vector<8x1024xf32>
    %cst_14 = arith.constant 0.0416666679 : f32
    %33 = vector.broadcast %cst_14 : f32 to vector<8x1024xf32>
    %34 = arith.addf %33, %32 : vector<8x1024xf32>
    %35 = arith.mulf %14, %34 : vector<8x1024xf32>
    %cst_15 = arith.constant -5.000000e-01 : f32
    %36 = vector.broadcast %cst_15 : f32 to vector<8x1024xf32>
    %37 = arith.addf %36, %35 : vector<8x1024xf32>
    %38 = arith.mulf %14, %37 : vector<8x1024xf32>
    %cst_16 = arith.constant 1.000000e+00 : f32
    %39 = vector.broadcast %cst_16 : f32 to vector<8x1024xf32>
    %40 = arith.addf %39, %38 : vector<8x1024xf32>
    %41 = arith.fptosi %7 : vector<8x1024xf32> to vector<8x1024xi32>
    %c3_i32 = arith.constant 3 : i32
    %42 = vector.broadcast %c3_i32 : i32 to vector<8x1024xi32>
    %43 = arith.andi %41, %42 : vector<8x1024xi32>
    %c1_i32 = arith.constant 1 : i32
    %44 = vector.broadcast %c1_i32 : i32 to vector<8x1024xi32>
    %45 = arith.cmpi eq, %43, %44 : vector<8x1024xi32>
    %c3_i32_17 = arith.constant 3 : i32
    %46 = vector.broadcast %c3_i32_17 : i32 to vector<8x1024xi32>
    %47 = arith.cmpi eq, %43, %46 : vector<8x1024xi32>
    %48 = arith.ori %45, %47 : vector<8x1024xi1>
    %49 = arith.select %48, %40, %27 : vector<8x1024xi1>, vector<8x1024xf32>
    %50 = arith.select %48, %27, %40 : vector<8x1024xi1>, vector<8x1024xf32>
    %c2_i32 = arith.constant 2 : i32
    %51 = vector.broadcast %c2_i32 : i32 to vector<8x1024xi32>
    %52 = arith.cmpi eq, %43, %51 : vector<8x1024xi32>
    %c3_i32_18 = arith.constant 3 : i32
    %53 = vector.broadcast %c3_i32_18 : i32 to vector<8x1024xi32>
    %54 = arith.cmpi eq, %43, %53 : vector<8x1024xi32>
    %55 = arith.ori %52, %54 : vector<8x1024xi1>
    %cst_19 = arith.constant 0.000000e+00 : f32
    %56 = vector.broadcast %cst_19 : f32 to vector<8x1024xf32>
    %57 = arith.subf %56, %49 : vector<8x1024xf32>
    %58 = arith.select %55, %57, %49 : vector<8x1024xi1>, vector<8x1024xf32>
    %c1_i32_20 = arith.constant 1 : i32
    %59 = vector.broadcast %c1_i32_20 : i32 to vector<8x1024xi32>
    %60 = arith.cmpi eq, %43, %59 : vector<8x1024xi32>
    %c2_i32_21 = arith.constant 2 : i32
    %61 = vector.broadcast %c2_i32_21 : i32 to vector<8x1024xi32>
    %62 = arith.cmpi eq, %43, %61 : vector<8x1024xi32>
    %63 = arith.ori %60, %62 : vector<8x1024xi1>
    %cst_22 = arith.constant 0.000000e+00 : f32
    %64 = vector.broadcast %cst_22 : f32 to vector<8x1024xf32>
    %65 = arith.subf %64, %50 : vector<8x1024xf32>
    %66 = arith.select %63, %65, %50 : vector<8x1024xi1>, vector<8x1024xf32>
    %67 = arith.mulf %2, %66 : vector<8x1024xf32>
    %68 = arith.subf %58, %67 : vector<8x1024xf32>
    %69 = vector.broadcast %0 : f32 to vector<8x1024xf32>
    %70 = arith.mulf %69, %68 : vector<8x1024xf32>
    %c0_23 = arith.constant 0 : index
    %c0_24 = arith.constant 0 : index
    %71 = vector.load %arg4[%c0_23, %c0_24] : memref<8x1024xf32, #tpu.memory_space<vmem>>, vector<8x1024xf32>
    tpu.vector_store %arg4[%c0_23, %c0_24], %70 {strides = array<i32>} : memref<8x1024xf32, #tpu.memory_space<vmem>>, vector<8x1024xf32>,
    return
  }
  func.func @transform_0(%arg0: i32) -> (i32, i32) {
    %c0_i32 = arith.constant 0 : i32
    %c0_i32_0 = arith.constant 0 : i32
    %c0_i32_1 = arith.constant 0 : i32
    return %c0_i32, %c0_i32_0 : i32, i32
  }
  func.func @transform_1(%arg0: i32) -> (i32, i32) {
    %c0_i32 = arith.constant 0 : i32
    %c0_i32_0 = arith.constant 0 : i32
    return %arg0, %c0_i32 : i32, i32
  }
  func.func @transform_2(%arg0: i32) -> (i32, i32) {
    %c0_i32 = arith.constant 0 : i32
    %c0_i32_0 = arith.constant 0 : i32
    return %arg0, %c0_i32 : i32, i32
  }
  func.func @transform_3(%arg0: i32) -> (i32, i32) {
    %c0_i32 = arith.constant 0 : i32
    %c0_i32_0 = arith.constant 0 : i32
    return %arg0, %c0_i32 : i32, i32
  }
}

</mosaic_0001>

<llo_original>
// kernel: tpu_custom_call.1
$region0: #{tpu_custom_call.1}
  #allocation0 [shape = 'u32[]', space=smem, size = 0x4, offset = 0x4, fixed_abs, tag = 'smem constant byte address 0x4 - core index']
  #allocation1 [shape = 'u32[72,128]{1,0:T(1,128)}', space=vmem, size = 0x9000, scoped, tag = 'internal scratch']
  #allocation2 [shape = 'f32[1,1]{1,0:T(1,128)S(6)}', space=smem, size = 0x200, scoped, tag = 'scoped memory for tpu_custom_call.1']
  %s0 = inlined_call_operand.<no memory space> [shape: f32[1,1], index: 0, kind: input, shape index: {}]
  %s1 = inlined_call_operand.hbm [shape: f32[8,1024], index: 1, kind: input, shape index: {}]
  %s2 = inlined_call_operand.hbm [shape: f32[8,1024], index: 2, kind: input, shape index: {}]
  %s3 = inlined_call_operand.hbm [shape: f32[8,1024], index: 3, kind: output, shape index: {}]
  %s4 = sld [smem:[#allocation0]]
  $region30: #{tpu_custom_call.1} parent=0
    _
  %s6 = ssub.s32 1, %s4
  %s7 = scalar_select 0, %s6, %s4
  %8 = sst [smem:[#allocation2]] %s0
  $region1: #{tpu_custom_call.1} parent=0
    #allocation3 [shape = 'u8[32768]{0}', space=vmem, size = 0x8000, scoped, tag = 'input window, operand 1, single buffered']
    #allocation4 [shape = 's32[1]{0}', space=sflag, size = 0x4, scoped, tag = 'scoped memory for tpu_custom_call.1']
    #allocation5 [shape = 's32[1]{0}', space=sflag, size = 0x4, scoped, tag = 'scoped memory for tpu_custom_call.1']
    #allocation6 [shape = 'u8[32768]{0}', space=vmem, size = 0x8000, scoped, tag = 'input window, operand 2, single buffered']
    #allocation7 [shape = 's32[1]{0}', space=sflag, size = 0x4, scoped, tag = 'scoped memory for tpu_custom_call.1']
    #allocation8 [shape = 'u8[32768]{0}', space=vmem, size = 0x8000, scoped, tag = 'output window, operand 0, single buffered']
    %9 = vsyncpa [#allocation4], 0
    %10 = vsyncpa [#allocation7], 0
    %11 = vsyncpa [#allocation5], 0
    // Predicated region
    $region2: #{tpu_custom_call.1} parent=1 // pred_check
      _
    $region3: #{tpu_custom_call.1} parent=1 // pred_check_branch
      %13 = sbr.rel (0) target = $region5
    $region4: #{tpu_custom_call.1} parent=1 // pred_region
      _
    $region5: #{tpu_custom_call.1} parent=1 // pred_fallthru
      _
    // Predicated region
    $region6: #{tpu_custom_call.1} parent=1 // pred_check
      _
    $region7: #{tpu_custom_call.1} parent=1 // pred_check_branch
      %15 = sbr.rel (0) target = $region9
    $region8: #{tpu_custom_call.1} parent=1 // pred_region
      %17 = vsyncadd [#allocation4], 0
      %s19 = sshll.u32 %s1, 4
      %s20 = int_to_ptr.hbm [resolvable:$true] %s19
      %s21 = sshll.u32 [#allocation3], 4
      %s22 = int_to_ptr.vmem [resolvable:$true] %s21
      %24 = dma.hbm_to_vmem [thread:$0]  %s20, 1024, %s22, [#allocation4]
    $region9: #{tpu_custom_call.1} parent=1 // pred_fallthru
      _
    // Predicated region
    $region10: #{tpu_custom_call.1} parent=1 // pred_check
      _
    $region11: #{tpu_custom_call.1} parent=1 // pred_check_branch
      %26 = sbr.rel (0) target = $region13
    $region12: #{tpu_custom_call.1} parent=1 // pred_region
      %28 = vsyncadd [#allocation7], 0
      %s30 = sshll.u32 %s2, 4
      %s31 = int_to_ptr.hbm [resolvable:$true] %s30
      %s32 = sshll.u32 [#allocation6], 4
      %s33 = int_to_ptr.vmem [resolvable:$true] %s32
      %35 = dma.hbm_to_vmem [thread:$0]  %s31, 1024, %s33, [#allocation7]
    $region13: #{tpu_custom_call.1} parent=1 // pred_fallthru
      _
    // Predicated region
    $region14: #{tpu_custom_call.1} parent=1 // pred_check
      _
    $region15: #{tpu_custom_call.1} parent=1 // pred_check_branch
      %37 = sbr.rel (0) target = $region17
    $region16: #{tpu_custom_call.1} parent=1 // pred_region
      %39 = dma.done [#allocation4], 1024
    $region17: #{tpu_custom_call.1} parent=1 // pred_fallthru
      _
    // Predicated region
    $region18: #{tpu_custom_call.1} parent=1 // pred_check
      _
    $region19: #{tpu_custom_call.1} parent=1 // pred_check_branch
      %41 = sbr.rel (0) target = $region21
    $region20: #{tpu_custom_call.1} parent=1 // pred_region
      %43 = dma.done [#allocation7], 1024
    $region21: #{tpu_custom_call.1} parent=1 // pred_fallthru
      _
    %s44 = sld [smem:[#allocation2]]
    %v45 = vld [vmem:[#allocation6] sm:$0xff]
    %v46 = vld [vmem:[#allocation6 + $0x8] sm:$0xff]
    %v47 = vld [vmem:[#allocation6 + $0x10] sm:$0xff]
    %v48 = vld [vmem:[#allocation6 + $0x18] sm:$0xff]
    %v49 = vld [vmem:[#allocation6 + $0x20] sm:$0xff]
    %v50 = vld [vmem:[#allocation6 + $0x28] sm:$0xff]
    %v51 = vld [vmem:[#allocation6 + $0x30] sm:$0xff]
    %v52 = vld [vmem:[#allocation6 + $0x38] sm:$0xff]
    %v53 = vld [vmem:[#allocation3] sm:$0xff]
    %v54 = vld [vmem:[#allocation3 + $0x8] sm:$0xff]
    %v55 = vld [vmem:[#allocation3 + $0x10] sm:$0xff]
    %v56 = vld [vmem:[#allocation3 + $0x18] sm:$0xff]
    %v57 = vld [vmem:[#allocation3 + $0x20] sm:$0xff]
    %v58 = vld [vmem:[#allocation3 + $0x28] sm:$0xff]
    %v59 = vld [vmem:[#allocation3 + $0x30] sm:$0xff]
    %v60 = vld [vmem:[#allocation3 + $0x38] sm:$0xff]
    %v61 = vmul.f32 %v45, 0.63661975
    %v62 = vmul.f32 %v46, 0.63661975
    %v63 = vmul.f32 %v47, 0.63661975
    %v64 = vmul.f32 %v48, 0.63661975
    %v65 = vmul.f32 %v49, 0.63661975
    %v66 = vmul.f32 %v50, 0.63661975
    %v67 = vmul.f32 %v51, 0.63661975
    %v68 = vmul.f32 %v52, 0.63661975
    %v69 = vadd.f32 %v61, 0.5
    %v70 = vadd.f32 %v62, 0.5
    %v71 = vadd.f32 %v63, 0.5
    %v72 = vadd.f32 %v64, 0.5
    %v73 = vadd.f32 %v65, 0.5
    %v74 = vadd.f32 %v66, 0.5
    %v75 = vadd.f32 %v67, 0.5
    %v76 = vadd.f32 %v68, 0.5
    %v77 = vfloor.f32 %v69
    %v78 = vfloor.f32 %v70
    %v79 = vfloor.f32 %v71
    %v80 = vfloor.f32 %v72
    %v81 = vfloor.f32 %v73
    %v82 = vfloor.f32 %v74
    %v83 = vfloor.f32 %v75
    %v84 = vfloor.f32 %v76
    %v85 = vmul.f32 %v77, 1.5707963
    %v86 = vmul.f32 %v78, 1.5707963
    %v87 = vmul.f32 %v79, 1.5707963
    %v88 = vmul.f32 %v80, 1.5707963
    %v89 = vmul.f32 %v81, 1.5707963
    %v90 = vmul.f32 %v82, 1.5707963
    %v91 = vmul.f32 %v83, 1.5707963
    %v92 = vmul.f32 %v84, 1.5707963
    %v93 = vsub.f32 %v45, %v85
    %v94 = vsub.f32 %v46, %v86
    %v95 = vsub.f32 %v47, %v87
    %v96 = vsub.f32 %v48, %v88
    %v97 = vsub.f32 %v49, %v89
    %v98 = vsub.f32 %v50, %v90
    %v99 = vsub.f32 %v51, %v91
    %v100 = vsub.f32 %v52, %v92
    %v101 = vmul.f32 %v77, 7.5497894e-08
    %v102 = vmul.f32 %v78, 7.5497894e-08
    %v103 = vmul.f32 %v79, 7.5497894e-08
    %v104 = vmul.f32 %v80, 7.5497894e-08
    %v105 = vmul.f32 %v81, 7.5497894e-08
    %v106 = vmul.f32 %v82, 7.5497894e-08
    %v107 = vmul.f32 %v83, 7.5497894e-08
    %v108 = vmul.f32 %v84, 7.5497894e-08
    %v109 = vsub.f32 %v93, %v101
    %v110 = vsub.f32 %v94, %v102
    %v111 = vsub.f32 %v95, %v103
    %v112 = vsub.f32 %v96, %v104
    %v113 = vsub.f32 %v97, %v105
    %v114 = vsub.f32 %v98, %v106
    %v115 = vsub.f32 %v99, %v107
    %v116 = vsub.f32 %v100, %v108
    %v117 = vmul.f32 %v109, %v109
    %v118 = vmul.f32 %v110, %v110
    %v119 = vmul.f32 %v111, %v111
    %v120 = vmul.f32 %v112, %v112
    %v121 = vmul.f32 %v113, %v113
    %v122 = vmul.f32 %v114, %v114
    %v123 = vmul.f32 %v115, %v115
    %v124 = vmul.f32 %v116, %v116
    %v125 = vmul.f32 %v109, %v117
    %v126 = vmul.f32 %v110, %v118
    %v127 = vmul.f32 %v111, %v119
    %v128 = vmul.f32 %v112, %v120
    %v129 = vmul.f32 %v113, %v121
    %v130 = vmul.f32 %v114, %v122
    %v131 = vmul.f32 %v115, %v123
    %v132 = vmul.f32 %v116, %v124
    %v133 = vmul.f32 %v117, 2.7557314e-06
    %v134 = vmul.f32 %v118, 2.7557314e-06
    %v135 = vmul.f32 %v119, 2.7557314e-06
    %v136 = vmul.f32 %v120, 2.7557314e-06
    %v137 = vmul.f32 %v121, 2.7557314e-06
    %v138 = vmul.f32 %v122, 2.7557314e-06
    %v139 = vmul.f32 %v123, 2.7557314e-06
    %v140 = vmul.f32 %v124, 2.7557314e-06
    %v141 = vadd.f32 %v133, -0.0001984127
    %v142 = vadd.f32 %v134, -0.0001984127
    %v143 = vadd.f32 %v135, -0.0001984127
    %v144 = vadd.f32 %v136, -0.0001984127
    %v145 = vadd.f32 %v137, -0.0001984127
    %v146 = vadd.f32 %v138, -0.0001984127
    %v147 = vadd.f32 %v139, -0.0001984127
    %v148 = vadd.f32 %v140, -0.0001984127
    %v149 = vmul.f32 %v117, %v141
    %v150 = vmul.f32 %v118, %v142
    %v151 = vmul.f32 %v119, %v143
    %v152 = vmul.f32 %v120, %v144
    %v153 = vmul.f32 %v121, %v145
    %v154 = vmul.f32 %v122, %v146
    %v155 = vmul.f32 %v123, %v147
    %v156 = vmul.f32 %v124, %v148
    %v157 = vadd.f32 %v149, 0.008333334
    %v158 = vadd.f32 %v150, 0.008333334
    %v159 = vadd.f32 %v151, 0.008333334
    %v160 = vadd.f32 %v152, 0.008333334
    %v161 = vadd.f32 %v153, 0.008333334
    %v162 = vadd.f32 %v154, 0.008333334
    %v163 = vadd.f32 %v155, 0.008333334
    %v164 = vadd.f32 %v156, 0.008333334
    %v165 = vmul.f32 %v117, %v157
    %v166 = vmul.f32 %v118, %v158
    %v167 = vmul.f32 %v119, %v159
    %v168 = vmul.f32 %v120, %v160
    %v169 = vmul.f32 %v121, %v161
    %v170 = vmul.f32 %v122, %v162
    %v171 = vmul.f32 %v123, %v163
    %v172 = vmul.f32 %v124, %v164
    %v173 = vadd.f32 %v165, -0.16666667
    %v174 = vadd.f32 %v166, -0.16666667
    %v175 = vadd.f32 %v167, -0.16666667
    %v176 = vadd.f32 %v168, -0.16666667
    %v177 = vadd.f32 %v169, -0.16666667
    %v178 = vadd.f32 %v170, -0.16666667
    %v179 = vadd.f32 %v171, -0.16666667
    %v180 = vadd.f32 %v172, -0.16666667
    %v181 = vmul.f32 %v125, %v173
    %v182 = vmul.f32 %v126, %v174
    %v183 = vmul.f32 %v127, %v175
    %v184 = vmul.f32 %v128, %v176
    %v185 = vmul.f32 %v129, %v177
    %v186 = vmul.f32 %v130, %v178
    %v187 = vmul.f32 %v131, %v179
    %v188 = vmul.f32 %v132, %v180
    %v189 = vadd.f32 %v109, %v181
    %v190 = vadd.f32 %v110, %v182
    %v191 = vadd.f32 %v111, %v183
    %v192 = vadd.f32 %v112, %v184
    %v193 = vadd.f32 %v113, %v185
    %v194 = vadd.f32 %v114, %v186
    %v195 = vadd.f32 %v115, %v187
    %v196 = vadd.f32 %v116, %v188
    %v197 = vmul.f32 %v117, 2.4801588e-05
    %v198 = vmul.f32 %v118, 2.4801588e-05
    %v199 = vmul.f32 %v119, 2.4801588e-05
    %v200 = vmul.f32 %v120, 2.4801588e-05
    %v201 = vmul.f32 %v121, 2.4801588e-05
    %v202 = vmul.f32 %v122, 2.4801588e-05
    %v203 = vmul.f32 %v123, 2.4801588e-05
    %v204 = vmul.f32 %v124, 2.4801588e-05
    %v205 = vadd.f32 %v197, -0.0013888889
    %v206 = vadd.f32 %v198, -0.0013888889
    %v207 = vadd.f32 %v199, -0.0013888889
    %v208 = vadd.f32 %v200, -0.0013888889
    %v209 = vadd.f32 %v201, -0.0013888889
    %v210 = vadd.f32 %v202, -0.0013888889
    %v211 = vadd.f32 %v203, -0.0013888889
    %v212 = vadd.f32 %v204, -0.0013888889
    %v213 = vmul.f32 %v117, %v205
    %v214 = vmul.f32 %v118, %v206
    %v215 = vmul.f32 %v119, %v207
    %v216 = vmul.f32 %v120, %v208
    %v217 = vmul.f32 %v121, %v209
    %v218 = vmul.f32 %v122, %v210
    %v219 = vmul.f32 %v123, %v211
    %v220 = vmul.f32 %v124, %v212
    %v221 = vadd.f32 %v213, 0.041666668
    %v222 = vadd.f32 %v214, 0.041666668
    %v223 = vadd.f32 %v215, 0.041666668
    %v224 = vadd.f32 %v216, 0.041666668
    %v225 = vadd.f32 %v217, 0.041666668
    %v226 = vadd.f32 %v218, 0.041666668
    %v227 = vadd.f32 %v219, 0.041666668
    %v228 = vadd.f32 %v220, 0.041666668
    %v229 = vmul.f32 %v117, %v221
    %v230 = vmul.f32 %v118, %v222
    %v231 = vmul.f32 %v119, %v223
    %v232 = vmul.f32 %v120, %v224
    %v233 = vmul.f32 %v121, %v225
    %v234 = vmul.f32 %v122, %v226
    %v235 = vmul.f32 %v123, %v227
    %v236 = vmul.f32 %v124, %v228
    %v237 = vadd.f32 %v229, -0.5
    %v238 = vadd.f32 %v230, -0.5
    %v239 = vadd.f32 %v231, -0.5
    %v240 = vadd.f32 %v232, -0.5
    %v241 = vadd.f32 %v233, -0.5
    %v242 = vadd.f32 %v234, -0.5
    %v243 = vadd.f32 %v235, -0.5
    %v244 = vadd.f32 %v236, -0.5
    %v245 = vmul.f32 %v117, %v237
    %v246 = vmul.f32 %v118, %v238
    %v247 = vmul.f32 %v119, %v239
    %v248 = vmul.f32 %v120, %v240
    %v249 = vmul.f32 %v121, %v241
    %v250 = vmul.f32 %v122, %v242
    %v251 = vmul.f32 %v123, %v243
    %v252 = vmul.f32 %v124, %v244
    %v253 = vadd.f32 %v245, 1.0
    %v254 = vadd.f32 %v246, 1.0
    %v255 = vadd.f32 %v247, 1.0
    %v256 = vadd.f32 %v248, 1.0
    %v257 = vadd.f32 %v249, 1.0
    %v258 = vadd.f32 %v250, 1.0
    %v259 = vadd.f32 %v251, 1.0
    %v260 = vadd.f32 %v252, 1.0
    %v261 = vcvt.f32.s32.to.zero.pseudo %v77
    %v262 = vcvt.f32.s32.to.zero.pseudo %v78
    %v263 = vcvt.f32.s32.to.zero.pseudo %v79
    %v264 = vcvt.f32.s32.to.zero.pseudo %v80
    %v265 = vcvt.f32.s32.to.zero.pseudo %v81
    %v266 = vcvt.f32.s32.to.zero.pseudo %v82
    %v267 = vcvt.f32.s32.to.zero.pseudo %v83
    %v268 = vcvt.f32.s32.to.zero.pseudo %v84
    %v269 = vand.u32 %v261, 3
    %v270 = vand.u32 %v262, 3
    %v271 = vand.u32 %v263, 3
    %v272 = vand.u32 %v264, 3
    %v273 = vand.u32 %v265, 3
    %v274 = vand.u32 %v266, 3
    %v275 = vand.u32 %v267, 3
    %v276 = vand.u32 %v268, 3
    %vm277 = vcmp.eq.s32.totalorder %v269, 1
    %vm278 = vcmp.eq.s32.totalorder %v270, 1
    %vm279 = vcmp.eq.s32.totalorder %v271, 1
    %vm280 = vcmp.eq.s32.totalorder %v272, 1
    %vm281 = vcmp.eq.s32.totalorder %v273, 1
    %vm282 = vcmp.eq.s32.totalorder %v274, 1
    %vm283 = vcmp.eq.s32.totalorder %v275, 1
    %vm284 = vcmp.eq.s32.totalorder %v276, 1
    %vm285 = vcmp.eq.s32.totalorder %v269, 3
    %vm286 = vcmp.eq.s32.totalorder %v270, 3
    %vm287 = vcmp.eq.s32.totalorder %v271, 3
    %vm288 = vcmp.eq.s32.totalorder %v272, 3
    %vm289 = vcmp.eq.s32.totalorder %v273, 3
    %vm290 = vcmp.eq.s32.totalorder %v274, 3
    %vm291 = vcmp.eq.s32.totalorder %v275, 3
    %vm292 = vcmp.eq.s32.totalorder %v276, 3
    %vm293 = vmor %vm277, %vm285
    %vm294 = vmor %vm278, %vm286
    %vm295 = vmor %vm279, %vm287
    %vm296 = vmor %vm280, %vm288
    %vm297 = vmor %vm281, %vm289
    %vm298 = vmor %vm282, %vm290
    %vm299 = vmor %vm283, %vm291
    %vm300 = vmor %vm284, %vm292
    %v301 = vsel %vm293, %v253, %v189
    %v302 = vsel %vm294, %v254, %v190
    %v303 = vsel %vm295, %v255, %v191
    %v304 = vsel %vm296, %v256, %v192
    %v305 = vsel %vm297, %v257, %v193
    %v306 = vsel %vm298, %v258, %v194
    %v307 = vsel %vm299, %v259, %v195
    %v308 = vsel %vm300, %v260, %v196
    %v309 = vsel %vm293, %v189, %v253
    %v310 = vsel %vm294, %v190, %v254
    %v311 = vsel %vm295, %v191, %v255
    %v312 = vsel %vm296, %v192, %v256
    %v313 = vsel %vm297, %v193, %v257
    %v314 = vsel %vm298, %v194, %v258
    %v315 = vsel %vm299, %v195, %v259
    %v316 = vsel %vm300, %v196, %v260
    %vm317 = vcmp.eq.s32.totalorder %v269, 2
    %vm318 = vcmp.eq.s32.totalorder %v270, 2
    %vm319 = vcmp.eq.s32.totalorder %v271, 2
    %vm320 = vcmp.eq.s32.totalorder %v272, 2
    %vm321 = vcmp.eq.s32.totalorder %v273, 2
    %vm322 = vcmp.eq.s32.totalorder %v274, 2
    %vm323 = vcmp.eq.s32.totalorder %v275, 2
    %vm324 = vcmp.eq.s32.totalorder %v276, 2
    %vm325 = vmor %vm317, %vm285
    %vm326 = vmor %vm318, %vm286
    %vm327 = vmor %vm319, %vm287
    %vm328 = vmor %vm320, %vm288
    %vm329 = vmor %vm321, %vm289
    %vm330 = vmor %vm322, %vm290
    %vm331 = vmor %vm323, %vm291
    %vm332 = vmor %vm324, %vm292
    %v333 = vsub.f32 0.0, %v301
    %v334 = vsub.f32 0.0, %v302
    %v335 = vsub.f32 0.0, %v303
    %v336 = vsub.f32 0.0, %v304
    %v337 = vsub.f32 0.0, %v305
    %v338 = vsub.f32 0.0, %v306
    %v339 = vsub.f32 0.0, %v307
    %v340 = vsub.f32 0.0, %v308
    %v341 = vsel %vm325, %v333, %v301
    %v342 = vsel %vm326, %v334, %v302
    %v343 = vsel %vm327, %v335, %v303
    %v344 = vsel %vm328, %v336, %v304
    %v345 = vsel %vm329, %v337, %v305
    %v346 = vsel %vm330, %v338, %v306
    %v347 = vsel %vm331, %v339, %v307
    %v348 = vsel %vm332, %v340, %v308
    %vm349 = vmor %vm277, %vm317
    %vm350 = vmor %vm278, %vm318
    %vm351 = vmor %vm279, %vm319
    %vm352 = vmor %vm280, %vm320
    %vm353 = vmor %vm281, %vm321
    %vm354 = vmor %vm282, %vm322
    %vm355 = vmor %vm283, %vm323
    %vm356 = vmor %vm284, %vm324
    %v357 = vsub.f32 0.0, %v309
    %v358 = vsub.f32 0.0, %v310
    %v359 = vsub.f32 0.0, %v311
    %v360 = vsub.f32 0.0, %v312
    %v361 = vsub.f32 0.0, %v313
    %v362 = vsub.f32 0.0, %v314
    %v363 = vsub.f32 0.0, %v315
    %v364 = vsub.f32 0.0, %v316
    %v365 = vsel %vm349, %v357, %v309
    %v366 = vsel %vm350, %v358, %v310
    %v367 = vsel %vm351, %v359, %v311
    %v368 = vsel %vm352, %v360, %v312
    %v369 = vsel %vm353, %v361, %v313
    %v370 = vsel %vm354, %v362, %v314
    %v371 = vsel %vm355, %v363, %v315
    %v372 = vsel %vm356, %v364, %v316
    %v373 = vmul.f32 %v53, %v365
    %v374 = vmul.f32 %v54, %v366
    %v375 = vmul.f32 %v55, %v367
    %v376 = vmul.f32 %v56, %v368
    %v377 = vmul.f32 %v57, %v369
    %v378 = vmul.f32 %v58, %v370
    %v379 = vmul.f32 %v59, %v371
    %v380 = vmul.f32 %v60, %v372
    %v381 = vsub.f32 %v341, %v373
    %v382 = vsub.f32 %v342, %v374
    %v383 = vsub.f32 %v343, %v375
    %v384 = vsub.f32 %v344, %v376
    %v385 = vsub.f32 %v345, %v377
    %v386 = vsub.f32 %v346, %v378
    %v387 = vsub.f32 %v347, %v379
    %v388 = vsub.f32 %v348, %v380
    %v389 = vstv %s44
    %v390 = vmul.f32 %v389, %v381
    %v391 = vmul.f32 %v389, %v382
    %v392 = vmul.f32 %v389, %v383
    %v393 = vmul.f32 %v389, %v384
    %v394 = vmul.f32 %v389, %v385
    %v395 = vmul.f32 %v389, %v386
    %v396 = vmul.f32 %v389, %v387
    %v397 = vmul.f32 %v389, %v388
    %398 = vst [vmem:[#allocation8] sm:$0xff] %v390
    %399 = vst [vmem:[#allocation8 + $0x8] sm:$0xff] %v391
    %400 = vst [vmem:[#allocation8 + $0x10] sm:$0xff] %v392
    %401 = vst [vmem:[#allocation8 + $0x18] sm:$0xff] %v393
    %402 = vst [vmem:[#allocation8 + $0x20] sm:$0xff] %v394
    %403 = vst [vmem:[#allocation8 + $0x28] sm:$0xff] %v395
    %404 = vst [vmem:[#allocation8 + $0x30] sm:$0xff] %v396
    %405 = vst [vmem:[#allocation8 + $0x38] sm:$0xff] %v397
    // Predicated region
    $region22: #{tpu_custom_call.1} parent=1 // pred_check
      _
    $region23: #{tpu_custom_call.1} parent=1 // pred_check_branch
      %407 = sbr.rel (0) target = $region25
    $region24: #{tpu_custom_call.1} parent=1 // pred_region
      %409 = vsyncadd [#allocation5], 0
      %s411 = sshll.u32 [#allocation8], 4
      %s412 = int_to_ptr.vmem [resolvable:$true] %s411
      %s413 = sshll.u32 %s3, 4
      %s414 = int_to_ptr.hbm [resolvable:$true] %s413
      %416 = dma.vmem_to_hbm [thread:$0]  %s412, 1024, %s414, [#allocation5]
    $region25: #{tpu_custom_call.1} parent=1 // pred_fallthru
      _
    // Predicated region
    $region26: #{tpu_custom_call.1} parent=1 // pred_check
      _
    $region27: #{tpu_custom_call.1} parent=1 // pred_check_branch
      %418 = sbr.rel (0) target = $region29
    $region28: #{tpu_custom_call.1} parent=1 // pred_region
      %420 = dma.done [#allocation5], 1024
    $region29: #{tpu_custom_call.1} parent=1 // pred_fallthru
      _
    %421 = vsyncpa [#allocation4], 1
    %422 = vsyncpa [#allocation7], 1
    %423 = vsyncpa [#allocation5], 1

</llo_original>
